<compile_context>
chip_gen: v7x
topology: tpu7x:2x2x1
jax: 0.10.0
libtpu: 0.0.40
codegen_flags: <defaults>
</compile_context>

<pallas_src>
import jax
import jax.numpy as jnp
from jax.experimental import pallas as pl
from jax.experimental.pallas import tpu as pltpu


def _identity_copy_kernel(x_ref, o_ref):
    # Pure pass-through: copy the current VMEM tile to the output tile.
    o_ref[...] = x_ref[...]


# Minimum second-to-last-dim tiling per element width (packed sublane rule).
_MIN_SUBLANES = {4: 8, 2: 16, 1: 32}

_MAX_LANE_COLS = 1024                  # lane-dense slab width cap (mult. of 128)
_BLOCK_BYTES = 2 * 1024 * 1024         # per-block; ~4x live in the pipeline
_RAGGED_PADDED_CAP = 4 * 1024 * 1024   # sublane-padded footprint cap, ragged path
_VMEM_LIMIT = 32 * 1024 * 1024


def _round_up(a, b):
    return ((a + b - 1) // b) * b


def _round_down(a, b):
    return (a // b) * b


def none_act(x: jax.Array, *, materialize: bool = False) -> jax.Array:
    """NoneAct forward pass (identity).

    Default path is a true no-op (returns x, zero HBM traffic), which is the
    exact semantics of the PyTorch module. `materialize=True` produces a fresh
    output buffer via a single-pass, lane-dense Pallas copy kernel.
    """
    if not materialize:
        # Identity needs no pallas_call at all — this is the fast path.
        return x

    orig_shape = x.shape
    n = x.size
    if n == 0:
        return x

    itemsize = jnp.dtype(x.dtype).itemsize
    min_sub = _MIN_SUBLANES.get(itemsize, 8)

    # --- Flatten to a lane-dense 2D slab (no padding, no extra HBM passes) ---
    if n % 128 == 0:
        cols = 128
        while cols * 2 <= _MAX_LANE_COLS and n % (cols * 2) == 0:
            cols *= 2
        rows = n // cols
    else:
        # Ragged total size: one full-extent (1, n) block. Its single sublane
        # pads to min_sub in VMEM, so gate on the *padded* footprint.
        padded_bytes = min_sub * _round_up(n, 128) * itemsize
        if padded_bytes > _RAGGED_PADDED_CAP:
            # Identity is exact either way; skip the copy kernel rather than
            # risk exceeding the VMEM limit with a sublane-padded mega-block.
            return x
        cols = n
        rows = 1
    x2 = x.reshape(rows, cols)

    # --- Pick row-slab size against the per-block budget -------------------
    budget_rows = max(min_sub, _round_down(_BLOCK_BYTES // (cols * itemsize), min_sub))
    if rows <= budget_rows:
        if rows >= 2 * min_sub:
            # Split into >=2 grid steps so the "parallel" axis can shard across
            # both v7x TensorCores (harmless on single-TC v5e/v6e).
            tile_rows = _round_up(pl.cdiv(rows, 2), min_sub)
        else:
            tile_rows = rows  # full-extent block: always legal
    else:
        tile_rows = budget_rows  # multiple of min_sub; last block may be partial

    grid = (pl.cdiv(rows, tile_rows),)

    out = pl.pallas_call(
        _identity_copy_kernel,
        out_shape=jax.ShapeDtypeStruct((rows, cols), x.dtype),
        grid=grid,
        in_specs=[pl.BlockSpec((tile_rows, cols), lambda i: (i, 0))],
        out_specs=pl.BlockSpec((tile_rows, cols), lambda i: (i, 0)),
        compiler_params=pltpu.CompilerParams(
            dimension_semantics=("parallel",),
            vmem_limit_bytes=_VMEM_LIMIT,
        ),
    )(x2)

    return out.reshape(orig_shape)


if __name__ == "__main__":
    key = jax.random.PRNGKey(0)

    # Primary shape consistent with a typical NCHW activation.
    x = jax.random.normal(key, (2, 4, 16, 16), dtype=jnp.float32)

    # Default NoneAct forward: true no-op (zero HBM traffic).
    y = jax.block_until_ready(none_act(x))
    assert y.shape == x.shape and y.dtype == x.dtype
    assert bool(jnp.all(y == x))

    # Pallas copy path (fresh output buffer), exercised to verify the kernel.
    ym = jax.block_until_ready(none_act(x, materialize=True))
    assert ym.shape == x.shape and ym.dtype == x.dtype
    assert bool(jnp.all(ym == x))

    # bf16 input (exercises the 16-sublane minimum).
    xb = jax.random.normal(key, (4, 8, 32), dtype=jnp.bfloat16)
    yb = jax.block_until_ready(none_act(xb, materialize=True))
    assert yb.shape == xb.shape and yb.dtype == xb.dtype
    assert bool(jnp.all(yb == xb))

    # Odd, non-128-aligned shape (ragged full-extent block path).
    xo = jax.random.normal(key, (7, 13), dtype=jnp.float32)
    yo = jax.block_until_ready(none_act(xo, materialize=True))
    assert yo.shape == xo.shape and yo.dtype == xo.dtype
    assert bool(jnp.all(yo == xo))

    # Multi-step grid path (2 x 1 MiB blocks -> both v7x TCs can participate).
    xg = jax.random.normal(key, (512, 1024), dtype=jnp.float32)
    yg = jax.block_until_ready(none_act(xg, materialize=True))
    assert yg.shape == xg.shape and yg.dtype == xg.dtype
    assert bool(jnp.all(yg == xg))

    print("KERNEL_OK")
</pallas_src>

<mosaic_0001>
module attributes {stable_mosaic.version = 11 : i64} {
  func.func @_identity_copy_kernel(%arg0: i32, %arg1: memref<2x1024xf32, #tpu.memory_space<vmem>>, %arg2: memref<2x1024xf32, #tpu.memory_space<vmem>>) attributes {dimension_semantics = [#tpu.dimension_semantics<parallel>], iteration_bounds = array<i64: 1>, scalar_prefetch = 0 : i64, scratch_operands = 0 : i64, tpu.core_type = #tpu.core_type<tc>, window_params = [{transform_indices = @transform_0, window_bounds = array<i64: 2, 1024>}, {transform_indices = @transform_1, window_bounds = array<i64: 2, 1024>}]} {
    %c0 = arith.constant 0 : index
    %c0_0 = arith.constant 0 : index
    %0 = vector.load %arg1[%c0, %c0_0] : memref<2x1024xf32, #tpu.memory_space<vmem>>, vector<2x1024xf32>
    %c0_1 = arith.constant 0 : index
    %c0_2 = arith.constant 0 : index
    %1 = vector.load %arg2[%c0_1, %c0_2] : memref<2x1024xf32, #tpu.memory_space<vmem>>, vector<2x1024xf32>
    tpu.vector_store %arg2[%c0_1, %c0_2], %0 {strides = array<i32>} : memref<2x1024xf32, #tpu.memory_space<vmem>>, vector<2x1024xf32>,
    return
  }
  func.func @transform_0(%arg0: i32) -> (i32, i32) {
    %c0_i32 = arith.constant 0 : i32
    %c0_i32_0 = arith.constant 0 : i32
    return %arg0, %c0_i32 : i32, i32
  }
  func.func @transform_1(%arg0: i32) -> (i32, i32) {
    %c0_i32 = arith.constant 0 : i32
    %c0_i32_0 = arith.constant 0 : i32
    return %arg0, %c0_i32 : i32, i32
  }
}

</mosaic_0001>

<llo_original>
// kernel: tpu_custom_call.1
$region0: #{tpu_custom_call.1}
  #allocation0 [shape = 'u32[]', space=smem, size = 0x4, offset = 0x4, fixed_abs, tag = 'smem constant byte address 0x4 - core index']
  #allocation1 [shape = 'u32[144,128]{1,0:T(1,128)}', space=vmem, size = 0x12000, scoped, tag = 'internal scratch']
  %s0 = inlined_call_operand.hbm [shape: f32[2,1024], index: 0, kind: input, shape index: {}]
  %s1 = inlined_call_operand.hbm [shape: f32[2,1024], index: 1, kind: output, shape index: {}]
  %s2 = sld [smem:[#allocation0]]
  $region18: #{tpu_custom_call.1} parent=0
    _
  %s4 = ssub.s32 1, %s2
  %s5 = scalar_select 0, %s4, %s2
  $region1: #{tpu_custom_call.1} parent=0
    #allocation2 [shape = 'u8[8192]{0}', space=vmem, size = 0x2000, scoped, tag = 'input window, operand 0, single buffered']
    #allocation3 [shape = 's32[1]{0}', space=sflag, size = 0x4, scoped, tag = 'scoped memory for tpu_custom_call.1']
    #allocation4 [shape = 's32[1]{0}', space=sflag, size = 0x4, scoped, tag = 'scoped memory for tpu_custom_call.1']
    #allocation5 [shape = 'u8[8192]{0}', space=vmem, size = 0x2000, scoped, tag = 'output window, operand 0, single buffered']
    %6 = vsyncpa [#allocation3], 0
    %7 = vsyncpa [#allocation4], 0
    // Predicated region
    $region2: #{tpu_custom_call.1} parent=1 // pred_check
      _
    $region3: #{tpu_custom_call.1} parent=1 // pred_check_branch
      %9 = sbr.rel (0) target = $region5
    $region4: #{tpu_custom_call.1} parent=1 // pred_region
      %s11 = ssub.s32 256, 256
      %12 = vsyncadd [#allocation3], %s11
      %s14 = sshll.u32 [#allocation2], 4
      %s15 = int_to_ptr.vmem [resolvable:$true] %s14
      %17 = dma.hbm_to_vmem [thread:$0]  %s0, 256, %s15, [#allocation3]
    $region5: #{tpu_custom_call.1} parent=1 // pred_fallthru
      _
    // Predicated region
    $region6: #{tpu_custom_call.1} parent=1 // pred_check
      _
    $region7: #{tpu_custom_call.1} parent=1 // pred_check_branch
      %19 = sbr.rel (0) target = $region9
    $region8: #{tpu_custom_call.1} parent=1 // pred_region
      %20 = dma.done [#allocation3], 256
    $region9: #{tpu_custom_call.1} parent=1 // pred_fallthru
      _
    %v21 = vld [vmem:[#allocation2] sm:$0xff]
    %v22 = vld [vmem:[#allocation2 + $0x8] sm:$0xff]
    %23 = vst [vmem:[#allocation5] sm:$0xff] %v21
    %24 = vst [vmem:[#allocation5 + $0x8] sm:$0xff] %v22
    // Predicated region
    $region10: #{tpu_custom_call.1} parent=1 // pred_check
      _
    $region11: #{tpu_custom_call.1} parent=1 // pred_check_branch
      %26 = sbr.rel (0) target = $region13
    $region12: #{tpu_custom_call.1} parent=1 // pred_region
      %s28 = ssub.s32 256, 256
      %29 = vsyncadd [#allocation4], %s28
      %s31 = sshll.u32 [#allocation5], 4
      %s32 = int_to_ptr.vmem [resolvable:$true] %s31
      %34 = dma.vmem_to_hbm [thread:$0]  %s32, 256, %s1, [#allocation4]
    $region13: #{tpu_custom_call.1} parent=1 // pred_fallthru
      _
    // Predicated region
    $region14: #{tpu_custom_call.1} parent=1 // pred_check
      _
    $region15: #{tpu_custom_call.1} parent=1 // pred_check_branch
      %36 = sbr.rel (0) target = $region17
    $region16: #{tpu_custom_call.1} parent=1 // pred_region
      %37 = dma.done [#allocation4], 256
    $region17: #{tpu_custom_call.1} parent=1 // pred_fallthru
      _
    %38 = vsyncpa [#allocation3], 1
    %39 = vsyncpa [#allocation4], 1

</llo_original>
